<compile_context>
chip_gen: v5e
topology: v5e:2x2
jax: 0.10.0
libtpu: 0.0.40
codegen_flags: <defaults>
</compile_context>

<pallas_src>
import functools

import jax
import jax.numpy as jnp
from jax.experimental import pallas as pl
from jax.experimental.pallas import tpu as pltpu


# ----------------------------------------------------------------------------
# Fused recurrent kernel: one grid step == one timestep of the TGCN cell.
# ----------------------------------------------------------------------------
def _atgcn_step_kernel(x_ref, nm_ref, dd_ref,
                       m1_ref, e1_ref, b1_ref,
                       m2_ref, e2_ref, b2_ref,
                       ml_ref, bl_ref,
                       out_ref, h_ref, *, gate_split):
    t = pl.program_id(0)

    @pl.when(t == 0)
    def _init():                               # h0 = 0, stays resident in VMEM scratch
        h_ref[...] = jnp.zeros_like(h_ref)

    # ---- GCN propagate: one x @ base_nm per step + diagonal correction for the
    #      accumulated in-place `weight_mat += eye` of every GCNConv call. ----
    x = x_ref[0]                                                        # (B, N)
    xb = jnp.dot(x, nm_ref[...], preferred_element_type=jnp.float32)    # (B, N)
    xd = x * dd_ref[...]                                                # (B, N)
    kf = (2 * t + 1).astype(jnp.float32)
    g1 = xb + kf * xd            # GCN output feeding graph_conv1 (1x1 lin folded into E1)
    g2 = xb + (kf + 1.0) * xd    # GCN output feeding graph_conv2

    h = h_ref[...]                                                      # (B, N*H)

    # ---- graph_conv1 -> sigmoid ; torch chunk(dim=1) == lane split at N*H ----
    pre1 = (jnp.dot(h, m1_ref[...], preferred_element_type=jnp.float32)
            + jnp.dot(g1, e1_ref[...], preferred_element_type=jnp.float32)
            + b1_ref[...])                                              # (B, 2*N*H)
    ru = jax.nn.sigmoid(pre1)
    r = ru[:, :gate_split]
    u = ru[:, gate_split:]

    # ---- graph_conv2 -> tanh ----
    pre2 = (jnp.dot(r * h, m2_ref[...], preferred_element_type=jnp.float32)
            + jnp.dot(g2, e2_ref[...], preferred_element_type=jnp.float32)
            + b2_ref[...])                                              # (B, N*H)
    c = jnp.tanh(pre2)

    # ---- GRU update (elementwise, flat layout), hidden stays in VMEM ----
    h_new = u * h + (1.0 - u) * c
    h_ref[...] = h_new

    # ---- final Linear folded into the last grid step ----
    @pl.when(t == pl.num_programs(0) - 1)
    def _final():
        out_ref[...] = (jnp.dot(h_new, ml_ref[...],
                                preferred_element_type=jnp.float32)
                        + bl_ref[...])                                  # (B, N*O)


# ----------------------------------------------------------------------------
# Parameter init (deterministic, matches shapes/init-style of the PyTorch module)
# ----------------------------------------------------------------------------
def init_params(key, hidden_dim, output_dim):
    H = hidden_dim
    ks = jax.random.split(key, 6)

    def xavier(k, shape):
        bound = (6.0 / (shape[0] + shape[1])) ** 0.5
        return jax.random.uniform(k, shape, jnp.float32, -bound, bound)

    lb = 1.0 / (H ** 0.5)
    return {
        "gc1_w": xavier(ks[0], (H + 1, 2 * H)),          # TGCNGraphConvolution #1 weights
        "gc1_b": jnp.full((2 * H,), 1.0, jnp.float32),   # bias init = 1.0
        "gc2_w": xavier(ks[1], (H + 1, H)),              # TGCNGraphConvolution #2 weights
        "gc2_b": jnp.zeros((H,), jnp.float32),           # bias init = 0.0
        "gcn1_lin": jax.random.uniform(ks[2], (), jnp.float32, -1.0, 1.0),  # GCN Linear(1,1)
        "gcn1_bias": jnp.zeros((), jnp.float32),         # GCN bias zeroed in reset_parameters
        "gcn2_lin": jax.random.uniform(ks[3], (), jnp.float32, -1.0, 1.0),
        "gcn2_bias": jnp.zeros((), jnp.float32),
        "lin_w": jax.random.uniform(ks[4], (output_dim, H), jnp.float32, -lb, lb),
        "lin_b": jax.random.uniform(ks[5], (output_dim,), jnp.float32, -lb, lb),
    }


# ----------------------------------------------------------------------------
# ATGCN forward (single fused pallas_call over the whole sequence)
# ----------------------------------------------------------------------------
def atgcn_forward(params, inputs, adj_mat, weight_mat, *, hidden_dim, output_dim):
    B, T, N = inputs.shape
    H, O = hidden_dim, output_dim
    L = N * H          # flattened (node, hidden) length — the torch hidden layout
    L2 = N * 2 * H
    LO = N * O
    f32 = jnp.float32

    # ---- dense normalized adjacency (exact rewrite of the sparse GCN) ----
    eye = jnp.eye(N, dtype=f32)
    mask = (adj_mat != 0).astype(f32)
    C = mask + eye                                   # edge multiset counts (with self-loops)
    deg = jnp.sum(C, axis=0)                         # degree(col)
    dinv = jnp.where(deg > 0, jax.lax.rsqrt(deg), 0.0)
    D = C * dinv[:, None] * dinv[None, :]
    base_nm = (D * weight_mat).astype(f32)           # (N, N)
    d_diag = jnp.diagonal(D).reshape(1, N).astype(f32)  # per `+= eye`: x @ (D*I) = x * diag(D)

    # ---- fold the GCN 1x1 Linear scalar into the "x" column of the dense weights and
    #      the GCN bias into the dense bias (both GCNs have out_channels == 1) ----
    w1x = params["gcn1_lin"] * params["gc1_w"][0, :]                       # (2H,)
    w1h = params["gc1_w"][1:, :]                                           # (H, 2H)
    b1 = params["gc1_b"] + params["gcn1_bias"] * params["gc1_w"][0, :]     # (2H,)
    w2x = params["gcn2_lin"] * params["gc2_w"][0, :]                       # (H,)
    w2h = params["gc2_w"][1:, :]                                           # (H, H)
    b2 = params["gc2_b"] + params["gcn2_bias"] * params["gc2_w"][0, :]     # (H,)

    # ---- block-diagonal expansions: whole per-node dense layers as ONE lane-dense
    #      matmul each in the torch-flat layout (no in-kernel transposes/gathers) ----
    M1 = jnp.kron(eye, w1h).astype(f32)                # (L,  L2): h_flat -> conv1 pre-act
    E1 = jnp.kron(eye, w1x[None, :]).astype(f32)       # (N,  L2): gcn1   -> conv1 pre-act
    B1 = jnp.tile(b1, N).reshape(1, L2).astype(f32)
    M2 = jnp.kron(eye, w2h).astype(f32)                # (L,  L)
    E2 = jnp.kron(eye, w2x[None, :]).astype(f32)       # (N,  L)
    B2 = jnp.tile(b2, N).reshape(1, L).astype(f32)
    ML = jnp.kron(eye, params["lin_w"].T).astype(f32)  # (L,  LO): final Linear
    BL = jnp.tile(params["lin_b"], N).reshape(1, LO).astype(f32)

    x_seq = jnp.transpose(inputs, (1, 0, 2)).astype(f32)   # (T, B, N)

    const2 = lambda t: (0, 0)
    out_flat = pl.pallas_call(
        functools.partial(_atgcn_step_kernel, gate_split=L),
        out_shape=jax.ShapeDtypeStruct((B, LO), f32),
        grid=(T,),
        in_specs=[
            pl.BlockSpec((1, B, N), lambda t: (t, 0, 0)),   # x_t  (only per-step stream)
            pl.BlockSpec((N, N), const2),                   # base_nm   (resident)
            pl.BlockSpec((1, N), const2),                   # diag(D)
            pl.BlockSpec((L, L2), const2),                  # M1
            pl.BlockSpec((N, L2), const2),                  # E1
            pl.BlockSpec((1, L2), const2),                  # B1
            pl.BlockSpec((L, L), const2),                   # M2
            pl.BlockSpec((N, L), const2),                   # E2
            pl.BlockSpec((1, L), const2),                   # B2
            pl.BlockSpec((L, LO), const2),                  # ML
            pl.BlockSpec((1, LO), const2),                  # BL
        ],
        out_specs=pl.BlockSpec((B, LO), const2),
        scratch_shapes=[pltpu.VMEM((B, L), f32)],           # hidden state, VMEM-resident
        compiler_params=pltpu.CompilerParams(
            dimension_semantics=("arbitrary",)),
    )(x_seq, base_nm, d_diag, M1, E1, B1, M2, E2, B2, ML, BL)

    # out_flat[b, n*O + o] == Linear(h_T)[b, n, o]; torch then raw-reshapes (B,N,O)->(B,O,N),
    # which on the flat buffer is just this reshape.
    return out_flat.reshape(B, O, N)


# ----------------------------------------------------------------------------
# Pure-JAX reference mirroring the PyTorch code literally (for a self-check)
# ----------------------------------------------------------------------------
def _reference_forward(params, inputs, adj_mat, weight_mat, *, hidden_dim, output_dim):
    B, T, N = inputs.shape
    H, O = hidden_dim, output_dim
    eye = jnp.eye(N, dtype=jnp.float32)
    mask = (adj_mat != 0).astype(jnp.float32)
    C = mask + eye
    deg = jnp.sum(C, axis=0)
    dinv = jnp.where(deg > 0, jax.lax.rsqrt(deg), 0.0)
    D = C * dinv[:, None] * dinv[None, :]

    def gcn(x, k, glin, gbias):
        nm = D * (weight_mat + k * eye)
        return glin * (x @ nm) + gbias                   # (B, N)

    def graph_conv(x, h_flat, k, glin, gbias, w, b):
        g = gcn(x, k, glin, gbias)
        hs = h_flat.reshape(B, N, H)
        conc = jnp.concatenate([g[:, :, None], hs], axis=2)           # (B, N, H+1)
        out = conc.reshape(B * N, H + 1) @ w + b                      # (B*N, Odim)
        return out.reshape(B, N * w.shape[1])

    h = jnp.zeros((B, N * H), jnp.float32)
    for t in range(T):
        x_t = inputs[:, t, :]
        conc = jax.nn.sigmoid(graph_conv(x_t, h, 2 * t + 1,
                                         params["gcn1_lin"], params["gcn1_bias"],
                                         params["gc1_w"], params["gc1_b"]))
        r = conc[:, : N * H]
        u = conc[:, N * H:]
        c = jnp.tanh(graph_conv(x_t, r * h, 2 * t + 2,
                                params["gcn2_lin"], params["gcn2_bias"],
                                params["gc2_w"], params["gc2_b"]))
        h = u * h + (1.0 - u) * c
    out = h.reshape(B, N, H) @ params["lin_w"].T + params["lin_b"]    # (B, N, O)
    return out.reshape(B, O, N)


if __name__ == "__main__":
    B, T, N, H, O = 2, 8, 16, 8, 1      # batch, seq_len, node_size, hidden_dim, output_dim
    key = jax.random.PRNGKey(0)
    k_adj, k_w, k_x, k_p = jax.random.split(key, 4)

    adj = (jax.random.uniform(k_adj, (N, N)) > 0.6).astype(jnp.float32)
    weight_mat = jax.random.uniform(k_w, (N, N), dtype=jnp.float32)
    inputs = jax.random.normal(k_x, (B, T, N), dtype=jnp.float32)
    params = init_params(k_p, H, O)

    fwd = jax.jit(functools.partial(atgcn_forward, hidden_dim=H, output_dim=O))
    out = fwd(params, inputs, adj, weight_mat)
    jax.block_until_ready(out)
    assert out.shape == (B, O, N) and out.dtype == jnp.float32

    with jax.default_matmul_precision("highest"):
        ref = _reference_forward(params, inputs, adj, weight_mat,
                                 hidden_dim=H, output_dim=O)
    err = float(jnp.max(jnp.abs(out - ref)))
    assert err < 3e-2, f"kernel/reference mismatch: {err}"

    print("KERNEL_OK")
</pallas_src>

<mosaic_0001>
module attributes {stable_mosaic.version = 11 : i64} {
  func.func @_atgcn_step_kernel(%arg0: i32, %arg1: memref<1x2x16xf32, #tpu.memory_space<vmem>>, %arg2: memref<16x16xf32, #tpu.memory_space<vmem>>, %arg3: memref<1x16xf32, #tpu.memory_space<vmem>>, %arg4: memref<128x256xf32, #tpu.memory_space<vmem>>, %arg5: memref<16x256xf32, #tpu.memory_space<vmem>>, %arg6: memref<1x256xf32, #tpu.memory_space<vmem>>, %arg7: memref<128x128xf32, #tpu.memory_space<vmem>>, %arg8: memref<16x128xf32, #tpu.memory_space<vmem>>, %arg9: memref<1x128xf32, #tpu.memory_space<vmem>>, %arg10: memref<128x16xf32, #tpu.memory_space<vmem>>, %arg11: memref<1x16xf32, #tpu.memory_space<vmem>>, %arg12: memref<2x16xf32, #tpu.memory_space<vmem>>, %arg13: memref<2x128xf32, #tpu.memory_space<vmem>>) attributes {dimension_semantics = [#tpu.dimension_semantics<arbitrary>], iteration_bounds = array<i64: 8>, scalar_prefetch = 0 : i64, scratch_operands = 1 : i64, tpu.core_type = #tpu.core_type<tc>, window_params = [{transform_indices = @transform_0, window_bounds = array<i64: 1, 2, 16>}, {pipeline_mode = #tpu.pipeline_mode<synchronous>, transform_indices = @transform_1, window_bounds = array<i64: 16, 16>}, {pipeline_mode = #tpu.pipeline_mode<synchronous>, transform_indices = @transform_2, window_bounds = array<i64: 1, 16>}, {pipeline_mode = #tpu.pipeline_mode<synchronous>, transform_indices = @transform_3, window_bounds = array<i64: 128, 256>}, {pipeline_mode = #tpu.pipeline_mode<synchronous>, transform_indices = @transform_4, window_bounds = array<i64: 16, 256>}, {pipeline_mode = #tpu.pipeline_mode<synchronous>, transform_indices = @transform_5, window_bounds = array<i64: 1, 256>}, {pipeline_mode = #tpu.pipeline_mode<synchronous>, transform_indices = @transform_6, window_bounds = array<i64: 128, 128>}, {pipeline_mode = #tpu.pipeline_mode<synchronous>, transform_indices = @transform_7, window_bounds = array<i64: 16, 128>}, {pipeline_mode = #tpu.pipeline_mode<synchronous>, transform_indices = @transform_8, window_bounds = array<i64: 1, 128>}, {pipeline_mode = #tpu.pipeline_mode<synchronous>, transform_indices = @transform_9, window_bounds = array<i64: 128, 16>}, {pipeline_mode = #tpu.pipeline_mode<synchronous>, transform_indices = @transform_10, window_bounds = array<i64: 1, 16>}, {pipeline_mode = #tpu.pipeline_mode<synchronous>, transform_indices = @transform_11, window_bounds = array<i64: 2, 16>}]} {
    %c0_i32 = arith.constant 0 : i32
    %0 = arith.cmpi eq, %arg0, %c0_i32 : i32
    %1 = arith.extui %0 : i1 to i32
    %c0_i32_0 = arith.constant 0 : i32
    %2 = arith.cmpi ne, %1, %c0_i32_0 : i32
    scf.if %2 {
      %cst_31 = arith.constant 0.000000e+00 : f32
      %55 = vector.broadcast %cst_31 : f32 to vector<2x128xf32>
      %c0_32 = arith.constant 0 : index
      %c0_33 = arith.constant 0 : index
      %56 = vector.load %arg13[%c0_32, %c0_33] : memref<2x128xf32, #tpu.memory_space<vmem>>, vector<2x128xf32>
      tpu.vector_store %arg13[%c0_32, %c0_33], %55 {strides = array<i32>} : memref<2x128xf32, #tpu.memory_space<vmem>>, vector<2x128xf32>,
    } else {
    }
    %c0 = arith.constant 0 : index
    %c0_1 = arith.constant 0 : index
    %c0_2 = arith.constant 0 : index
    %3 = vector.load %arg1[%c0, %c0_1, %c0_2] : memref<1x2x16xf32, #tpu.memory_space<vmem>>, vector<1x2x16xf32>
    %4 = vector.shape_cast %3 : vector<1x2x16xf32> to vector<2x16xf32>
    %c0_3 = arith.constant 0 : index
    %c0_4 = arith.constant 0 : index
    %5 = vector.load %arg2[%c0_3, %c0_4] : memref<16x16xf32, #tpu.memory_space<vmem>>, vector<16x16xf32>
    %cst = arith.constant dense<0.000000e+00> : vector<2x16xf32>
    %6 = tpu.matmul %4, %5, %cst {dimension_numbers = #tpu.dot_dimension_numbers<[1], [0], [0], [1], [0, 0, 1, 1], [], []>} : vector<2x16xf32>, vector<16x16xf32>, vector<2x16xf32> -> vector<2x16xf32>
    %c0_5 = arith.constant 0 : index
    %c0_6 = arith.constant 0 : index
    %7 = vector.load %arg3[%c0_5, %c0_6] : memref<1x16xf32, #tpu.memory_space<vmem>>, vector<1x16xf32>
    %8 = vector.broadcast %7 : vector<1x16xf32> to vector<2x16xf32>
    %9 = arith.mulf %4, %8 : vector<2x16xf32>
    %c2_i32 = arith.constant 2 : i32
    %10 = arith.muli %c2_i32, %arg0 : i32
    %c1_i32 = arith.constant 1 : i32
    %11 = arith.addi %10, %c1_i32 : i32
    %12 = arith.sitofp %11 : i32 to f32
    %13 = vector.broadcast %12 : f32 to vector<2x16xf32>
    %14 = arith.mulf %13, %9 : vector<2x16xf32>
    %15 = arith.addf %6, %14 : vector<2x16xf32>
    %cst_7 = arith.constant 1.000000e+00 : f32
    %16 = arith.addf %12, %cst_7 : f32
    %17 = vector.broadcast %16 : f32 to vector<2x16xf32>
    %18 = arith.mulf %17, %9 : vector<2x16xf32>
    %19 = arith.addf %6, %18 : vector<2x16xf32>
    %c0_8 = arith.constant 0 : index
    %c0_9 = arith.constant 0 : index
    %20 = vector.load %arg13[%c0_8, %c0_9] : memref<2x128xf32, #tpu.memory_space<vmem>>, vector<2x128xf32>
    %c0_10 = arith.constant 0 : index
    %c0_11 = arith.constant 0 : index
    %21 = vector.load %arg4[%c0_10, %c0_11] : memref<128x256xf32, #tpu.memory_space<vmem>>, vector<128x256xf32>
    %cst_12 = arith.constant dense<0.000000e+00> : vector<2x256xf32>
    %22 = tpu.matmul %20, %21, %cst_12 {dimension_numbers = #tpu.dot_dimension_numbers<[1], [0], [0], [1], [0, 0, 1, 1], [], []>} : vector<2x128xf32>, vector<128x256xf32>, vector<2x256xf32> -> vector<2x256xf32>
    %c0_13 = arith.constant 0 : index
    %c0_14 = arith.constant 0 : index
    %23 = vector.load %arg5[%c0_13, %c0_14] : memref<16x256xf32, #tpu.memory_space<vmem>>, vector<16x256xf32>
    %cst_15 = arith.constant dense<0.000000e+00> : vector<2x256xf32>
    %24 = tpu.matmul %15, %23, %cst_15 {dimension_numbers = #tpu.dot_dimension_numbers<[1], [0], [0], [1], [0, 0, 1, 1], [], []>} : vector<2x16xf32>, vector<16x256xf32>, vector<2x256xf32> -> vector<2x256xf32>
    %25 = arith.addf %22, %24 : vector<2x256xf32>
    %c0_16 = arith.constant 0 : index
    %c0_17 = arith.constant 0 : index
    %26 = vector.load %arg6[%c0_16, %c0_17] : memref<1x256xf32, #tpu.memory_space<vmem>>, vector<1x256xf32>
    %27 = vector.broadcast %26 : vector<1x256xf32> to vector<2x256xf32>
    %28 = arith.addf %25, %27 : vector<2x256xf32>
    %29 = arith.negf %28 : vector<2x256xf32>
    %30 = math.exp %29 : vector<2x256xf32>
    %cst_18 = arith.constant 1.000000e+00 : f32
    %31 = vector.broadcast %cst_18 : f32 to vector<2x256xf32>
    %32 = arith.addf %31, %30 : vector<2x256xf32>
    %33 = arith.divf %31, %32 : vector<2x256xf32>
    %34 = vector.extract_strided_slice %33 {offsets = [0, 0], sizes = [2, 128], strides = [1, 1]} : vector<2x256xf32> to vector<2x128xf32>
    %35 = vector.extract_strided_slice %33 {offsets = [0, 128], sizes = [2, 128], strides = [1, 1]} : vector<2x256xf32> to vector<2x128xf32>
    %36 = arith.mulf %34, %20 : vector<2x128xf32>
    %c0_19 = arith.constant 0 : index
    %c0_20 = arith.constant 0 : index
    %37 = vector.load %arg7[%c0_19, %c0_20] : memref<128x128xf32, #tpu.memory_space<vmem>>, vector<128x128xf32>
    %cst_21 = arith.constant dense<0.000000e+00> : vector<2x128xf32>
    %38 = tpu.matmul %36, %37, %cst_21 {dimension_numbers = #tpu.dot_dimension_numbers<[1], [0], [0], [1], [0, 0, 1, 1], [], []>} : vector<2x128xf32>, vector<128x128xf32>, vector<2x128xf32> -> vector<2x128xf32>
    %c0_22 = arith.constant 0 : index
    %c0_23 = arith.constant 0 : index
    %39 = vector.load %arg8[%c0_22, %c0_23] : memref<16x128xf32, #tpu.memory_space<vmem>>, vector<16x128xf32>
    %cst_24 = arith.constant dense<0.000000e+00> : vector<2x128xf32>
    %40 = tpu.matmul %19, %39, %cst_24 {dimension_numbers = #tpu.dot_dimension_numbers<[1], [0], [0], [1], [0, 0, 1, 1], [], []>} : vector<2x16xf32>, vector<16x128xf32>, vector<2x128xf32> -> vector<2x128xf32>
    %41 = arith.addf %38, %40 : vector<2x128xf32>
    %c0_25 = arith.constant 0 : index
    %c0_26 = arith.constant 0 : index
    %42 = vector.load %arg9[%c0_25, %c0_26] : memref<1x128xf32, #tpu.memory_space<vmem>>, vector<1x128xf32>
    %43 = vector.broadcast %42 : vector<1x128xf32> to vector<2x128xf32>
    %44 = arith.addf %41, %43 : vector<2x128xf32>
    %45 = math.tanh %44 : vector<2x128xf32>
    %46 = arith.mulf %35, %20 : vector<2x128xf32>
    %cst_27 = arith.constant 1.000000e+00 : f32
    %47 = vector.broadcast %cst_27 : f32 to vector<2x128xf32>
    %48 = arith.subf %47, %35 : vector<2x128xf32>
    %49 = arith.mulf %48, %45 : vector<2x128xf32>
    %50 = arith.addf %46, %49 : vector<2x128xf32>
    %c0_28 = arith.constant 0 : index
    %c0_29 = arith.constant 0 : index
    %51 = vector.load %arg13[%c0_28, %c0_29] : memref<2x128xf32, #tpu.memory_space<vmem>>, vector<2x128xf32>
    tpu.vector_store %arg13[%c0_28, %c0_29], %50 {strides = array<i32>} : memref<2x128xf32, #tpu.memory_space<vmem>>, vector<2x128xf32>,
    %c7_i32 = arith.constant 7 : i32
    %52 = arith.cmpi eq, %arg0, %c7_i32 : i32
    %53 = arith.extui %52 : i1 to i32
    %c0_i32_30 = arith.constant 0 : i32
    %54 = arith.cmpi ne, %53, %c0_i32_30 : i32
    scf.if %54 {
      %c0_31 = arith.constant 0 : index
      %c0_32 = arith.constant 0 : index
      %55 = vector.load %arg10[%c0_31, %c0_32] : memref<128x16xf32, #tpu.memory_space<vmem>>, vector<128x16xf32>
      %cst_33 = arith.constant dense<0.000000e+00> : vector<2x16xf32>
      %56 = tpu.matmul %50, %55, %cst_33 {dimension_numbers = #tpu.dot_dimension_numbers<[1], [0], [0], [1], [0, 0, 1, 1], [], []>} : vector<2x128xf32>, vector<128x16xf32>, vector<2x16xf32> -> vector<2x16xf32>
      %c0_34 = arith.constant 0 : index
      %c0_35 = arith.constant 0 : index
      %57 = vector.load %arg11[%c0_34, %c0_35] : memref<1x16xf32, #tpu.memory_space<vmem>>, vector<1x16xf32>
      %58 = vector.broadcast %57 : vector<1x16xf32> to vector<2x16xf32>
      %59 = arith.addf %56, %58 : vector<2x16xf32>
      %c0_36 = arith.constant 0 : index
      %c0_37 = arith.constant 0 : index
      %60 = vector.load %arg12[%c0_36, %c0_37] : memref<2x16xf32, #tpu.memory_space<vmem>>, vector<2x16xf32>
      tpu.vector_store %arg12[%c0_36, %c0_37], %59 {strides = array<i32>} : memref<2x16xf32, #tpu.memory_space<vmem>>, vector<2x16xf32>,
    } else {
    }
    return
  }
  func.func @transform_0(%arg0: i32) -> (i32, i32, i32) {
    %c0_i32 = arith.constant 0 : i32
    %c0_i32_0 = arith.constant 0 : i32
    %c0_i32_1 = arith.constant 0 : i32
    return %arg0, %c0_i32, %c0_i32_0 : i32, i32, i32
  }
  func.func @transform_1(%arg0: i32) -> (i32, i32) {
    %c0_i32 = arith.constant 0 : i32
    %c0_i32_0 = arith.constant 0 : i32
    %c0_i32_1 = arith.constant 0 : i32
    return %c0_i32, %c0_i32_0 : i32, i32
  }
  func.func @transform_2(%arg0: i32) -> (i32, i32) {
    %c0_i32 = arith.constant 0 : i32
    %c0_i32_0 = arith.constant 0 : i32
    %c0_i32_1 = arith.constant 0 : i32
    return %c0_i32, %c0_i32_0 : i32, i32
  }
  func.func @transform_3(%arg0: i32) -> (i32, i32) {
    %c0_i32 = arith.constant 0 : i32
    %c0_i32_0 = arith.constant 0 : i32
    %c0_i32_1 = arith.constant 0 : i32
    return %c0_i32, %c0_i32_0 : i32, i32
  }
  func.func @transform_4(%arg0: i32) -> (i32, i32) {
    %c0_i32 = arith.constant 0 : i32
    %c0_i32_0 = arith.constant 0 : i32
    %c0_i32_1 = arith.constant 0 : i32
    return %c0_i32, %c0_i32_0 : i32, i32
  }
  func.func @transform_5(%arg0: i32) -> (i32, i32) {
    %c0_i32 = arith.constant 0 : i32
    %c0_i32_0 = arith.constant 0 : i32
    %c0_i32_1 = arith.constant 0 : i32
    return %c0_i32, %c0_i32_0 : i32, i32
  }
  func.func @transform_6(%arg0: i32) -> (i32, i32) {
    %c0_i32 = arith.constant 0 : i32
    %c0_i32_0 = arith.constant 0 : i32
    %c0_i32_1 = arith.constant 0 : i32
    return %c0_i32, %c0_i32_0 : i32, i32
  }
  func.func @transform_7(%arg0: i32) -> (i32, i32) {
    %c0_i32 = arith.constant 0 : i32
    %c0_i32_0 = arith.constant 0 : i32
    %c0_i32_1 = arith.constant 0 : i32
    return %c0_i32, %c0_i32_0 : i32, i32
  }
  func.func @transform_8(%arg0: i32) -> (i32, i32) {
    %c0_i32 = arith.constant 0 : i32
    %c0_i32_0 = arith.constant 0 : i32
    %c0_i32_1 = arith.constant 0 : i32
    return %c0_i32, %c0_i32_0 : i32, i32
  }
  func.func @transform_9(%arg0: i32) -> (i32, i32) {
    %c0_i32 = arith.constant 0 : i32
    %c0_i32_0 = arith.constant 0 : i32
    %c0_i32_1 = arith.constant 0 : i32
    return %c0_i32, %c0_i32_0 : i32, i32
  }
  func.func @transform_10(%arg0: i32) -> (i32, i32) {
    %c0_i32 = arith.constant 0 : i32
    %c0_i32_0 = arith.constant 0 : i32
    %c0_i32_1 = arith.constant 0 : i32
    return %c0_i32, %c0_i32_0 : i32, i32
  }
  func.func @transform_11(%arg0: i32) -> (i32, i32) {
    %c0_i32 = arith.constant 0 : i32
    %c0_i32_0 = arith.constant 0 : i32
    %c0_i32_1 = arith.constant 0 : i32
    return %c0_i32, %c0_i32_0 : i32, i32
  }
}

</mosaic_0001>

<llo_original>
// kernel: tile.24
$region0: #{tile.24}
  %s0 = inlined_call_operand.vmem [shape: f32[16,8], index: 0, kind: input, shape index: {}]
  %s1 = inlined_call_operand.vmem [shape: f32[1,128], index: 1, kind: output, shape index: {}]
  $region1: #{tile.24} parent=0
    #allocation0 [shape = 'u8[4096]{0}', space=vmem, size = 0x1000, scoped, tag = 'scoped mem for output reshape']
    %v2 = vld [vmem:[%s0] sm:$0x1]
    %vm3 = vcmask 64512
    %4 = vst.msk [vmem:[#allocation0] sm:$0x1] %vm3, %v2
    %s5 = scalar_lea.vmem %s0, 15
    %v6 = vld [vmem:[%s5] sm:$0x1]
    %7 = vrot.lane.b32.xlu0 %v6, 120
    %v8 = vpop.permute.xlu0 %7
    %vm9 = vcmask 1048512
    %10 = vst.msk [vmem:[#allocation0] sm:$0x1] %vm9, %v8
    %s11 = scalar_lea.vmem %s0, 14
    %v12 = vld [vmem:[%s11] sm:$0x1]
    %13 = vrot.lane.b32.xlu0 %v12, 112
    %v14 = vpop.permute.xlu0 %13
    %vm15 = vcmask 982912
    %16 = vst.msk [vmem:[#allocation0] sm:$0x1] %vm15, %v14
    %s17 = scalar_lea.vmem %s0, 13
    %v18 = vld [vmem:[%s17] sm:$0x1]
    %19 = vrot.lane.b32.xlu0 %v18, 104
    %v20 = vpop.permute.xlu0 %19
    %vm21 = vcmask 917312
    %22 = vst.msk [vmem:[#allocation0] sm:$0x1] %vm21, %v20
    %s23 = scalar_lea.vmem %s0, 12
    %v24 = vld [vmem:[%s23] sm:$0x1]
    %25 = vrot.lane.b32.xlu0 %v24, 96
    %v26 = vpop.permute.xlu0 %25
    %vm27 = vcmask 851712
    %28 = vst.msk [vmem:[#allocation0] sm:$0x1] %vm27, %v26
    %s29 = scalar_lea.vmem %s0, 11
    %v30 = vld [vmem:[%s29] sm:$0x1]
    %31 = vrot.lane.b32.xlu0 %v30, 88
    %v32 = vpop.permute.xlu0 %31
    %vm33 = vcmask 786112
    %34 = vst.msk [vmem:[#allocation0] sm:$0x1] %vm33, %v32
    %s35 = scalar_lea.vmem %s0, 10
    %v36 = vld [vmem:[%s35] sm:$0x1]
    %37 = vrot.lane.b32.xlu0 %v36, 80
    %v38 = vpop.permute.xlu0 %37
    %vm39 = vcmask 720512
    %40 = vst.msk [vmem:[#allocation0] sm:$0x1] %vm39, %v38
    %s41 = scalar_lea.vmem %s0, 9
    %v42 = vld [vmem:[%s41] sm:$0x1]
    %43 = vrot.lane.b32.xlu0 %v42, 72
    %v44 = vpop.permute.xlu0 %43
    %vm45 = vcmask 654912
    %46 = vst.msk [vmem:[#allocation0] sm:$0x1] %vm45, %v44
    %s47 = scalar_lea.vmem %s0, 8
    %v48 = vld [vmem:[%s47] sm:$0x1]
    %49 = vrot.lane.b32.xlu0 %v48, 64
    %v50 = vpop.permute.xlu0 %49
    %vm51 = vcmask 589312
    %52 = vst.msk [vmem:[#allocation0] sm:$0x1] %vm51, %v50
    %s53 = scalar_lea.vmem %s0, 7
    %v54 = vld [vmem:[%s53] sm:$0x1]
    %55 = vrot.lane.b32.xlu0 %v54, 56
    %v56 = vpop.permute.xlu0 %55
    %vm57 = vcmask 523712
    %58 = vst.msk [vmem:[#allocation0] sm:$0x1] %vm57, %v56
    %s59 = scalar_lea.vmem %s0, 6
    %v60 = vld [vmem:[%s59] sm:$0x1]
    %61 = vrot.lane.b32.xlu0 %v60, 48
    %v62 = vpop.permute.xlu0 %61
    %vm63 = vcmask 458112
    %64 = vst.msk [vmem:[#allocation0] sm:$0x1] %vm63, %v62
    %s65 = scalar_lea.vmem %s0, 5
    %v66 = vld [vmem:[%s65] sm:$0x1]
    %67 = vrot.lane.b32.xlu0 %v66, 40
    %v68 = vpop.permute.xlu0 %67
    %vm69 = vcmask 392512
    %70 = vst.msk [vmem:[#allocation0] sm:$0x1] %vm69, %v68
    %s71 = scalar_lea.vmem %s0, 4
    %v72 = vld [vmem:[%s71] sm:$0x1]
    %73 = vrot.lane.b32.xlu0 %v72, 32
    %v74 = vpop.permute.xlu0 %73
    %vm75 = vcmask 326912
    %76 = vst.msk [vmem:[#allocation0] sm:$0x1] %vm75, %v74
    %s77 = scalar_lea.vmem %s0, 3
    %v78 = vld [vmem:[%s77] sm:$0x1]
    %79 = vrot.lane.b32.xlu0 %v78, 24
    %v80 = vpop.permute.xlu0 %79
    %vm81 = vcmask 261312
    %82 = vst.msk [vmem:[#allocation0] sm:$0x1] %vm81, %v80
    %s83 = scalar_lea.vmem %s0, 2
    %v84 = vld [vmem:[%s83] sm:$0x1]
    %85 = vrot.lane.b32.xlu0 %v84, 16
    %v86 = vpop.permute.xlu0 %85
    %vm87 = vcmask 195712
    %88 = vst.msk [vmem:[#allocation0] sm:$0x1] %vm87, %v86
    %s89 = scalar_lea.vmem %s0, 1
    %v90 = vld [vmem:[%s89] sm:$0x1]
    %91 = vrot.lane.b32.xlu0 %v90, 8
    %v92 = vpop.permute.xlu0 %91
    %vm93 = vcmask 130112
    %94 = vst.msk [vmem:[#allocation0] sm:$0x1] %vm93, %v92
    %s96 = ssub.s32 2, 1
    %v97 = vld [vmem:[#allocation0] sm:%s96]
    %s99 = ssub.s32 2, 1
    %100 = vst [vmem:[%s1] sm:%s99] %v97

// kernel: tile.19
$region0: #{tile.19}
  %s0 = inlined_call_operand.vmem [shape: f32[16,16], index: 0, kind: input, shape index: {}]
  %s1 = inlined_call_operand.vmem [shape: f32[1,256], index: 1, kind: output, shape index: {}]
  $region1: #{tile.19} parent=0
    #allocation0 [shape = 'u8[8192]{0}', space=vmem, size = 0x2000, scoped, tag = 'scoped mem for output reshape']
    %s2 = smov 3
    %v3 = vld [vmem:[%s0] ss:$8 sm:%s2]
    %vm4 = vcmask 130048
    %5 = vst.msk [vmem:[#allocation0] ss:$8 sm:$0x3] %vm4, %v3
    %s6 = scalar_lea.vmem %s0, 7
    %s7 = smov 3
    %v8 = vld [vmem:[%s6] ss:$8 sm:%s7]
    %9 = vrot.lane.b32.xlu0 %v8, 112
    %v10 = vpop.permute.xlu0 %9
    %vm11 = vcmask 1048448
    %12 = vst.msk [vmem:[#allocation0] ss:$8 sm:$0x3] %vm11, %v10
    %s13 = scalar_lea.vmem %s0, 6
    %s14 = smov 3
    %v15 = vld [vmem:[%s13] ss:$8 sm:%s14]
    %16 = vrot.lane.b32.xlu0 %v15, 96
    %v17 = vpop.permute.xlu0 %16
    %vm18 = vcmask 917248
    %19 = vst.msk [vmem:[#allocation0] ss:$8 sm:$0x3] %vm18, %v17
    %s20 = scalar_lea.vmem %s0, 5
    %s21 = smov 3
    %v22 = vld [vmem:[%s20] ss:$8 sm:%s21]
    %23 = vrot.lane.b32.xlu0 %v22, 80
    %v24 = vpop.permute.xlu0 %23
    %vm25 = vcmask 786048
    %26 = vst.msk [vmem:[#allocation0] ss:$8 sm:$0x3] %vm25, %v24
    %s27 = scalar_lea.vmem %s0, 4
    %s28 = smov 3
    %v29 = vld [vmem:[%s27] ss:$8 sm:%s28]
    %30 = vrot.lane.b32.xlu0 %v29, 64
    %v31 = vpop.permute.xlu0 %30
    %vm32 = vcmask 654848
    %33 = vst.msk [vmem:[#allocation0] ss:$8 sm:$0x3] %vm32, %v31
    %s34 = scalar_lea.vmem %s0, 3
    %s35 = smov 3
    %v36 = vld [vmem:[%s34] ss:$8 sm:%s35]
    %37 = vrot.lane.b32.xlu0 %v36, 48
    %v38 = vpop.permute.xlu0 %37
    %vm39 = vcmask 523648
    %40 = vst.msk [vmem:[#allocation0] ss:$8 sm:$0x3] %vm39, %v38
    %s41 = scalar_lea.vmem %s0, 2
    %s42 = smov 3
    %v43 = vld [vmem:[%s41] ss:$8 sm:%s42]
    %44 = vrot.lane.b32.xlu0 %v43, 32
    %v45 = vpop.permute.xlu0 %44
    %vm46 = vcmask 392448
    %47 = vst.msk [vmem:[#allocation0] ss:$8 sm:$0x3] %vm46, %v45
    %s48 = scalar_lea.vmem %s0, 1
    %s49 = smov 3
    %v50 = vld [vmem:[%s48] ss:$8 sm:%s49]
    %51 = vrot.lane.b32.xlu0 %v50, 16
    %v52 = vpop.permute.xlu0 %51
    %vm53 = vcmask 261248
    %54 = vst.msk [vmem:[#allocation0] ss:$8 sm:$0x3] %vm53, %v52
    %s56 = ssub.s32 2, 1
    %v57 = vld [vmem:[#allocation0] sm:%s56]
    %s59 = ssub.s32 2, 1
    %60 = vst [vmem:[%s1] sm:%s59] %v57
    %s61 = scalar_lea.vmem [#allocation0], 8
    %v62 = vld [vmem:[%s61] sm:%s56]
    %s64 = ssub.s32 2, 1
    %s65 = scalar_lea.vmem %s1, 1
    %66 = vst [vmem:[%s65] sm:%s64] %v62

// kernel: atgcn_forward.1
$region0: #{atgcn_forward.1}
  #allocation0 [shape = 'u32[]', space=smem, size = 0x4, offset = 0x4, fixed_abs, tag = 'smem constant byte address 0x4 - core index']
  #allocation1 [shape = 'u32[72,128]{1,0:T(1,128)}', space=vmem, size = 0x9000, scoped, tag = 'internal scratch']
  #allocation2 [shape = 'f32[2,128]{1,0:T(2,128)}', space=vmem, size = 0x400, scoped, tag = 'scratch operand']
  %s0 = inlined_call_operand.vmem [shape: f32[8,2,16], index: 0, kind: input, shape index: {}]
  %s1 = inlined_call_operand.vmem [shape: f32[16,16], index: 1, kind: input, shape index: {}]
  %s2 = inlined_call_operand.vmem [shape: f32[1,16], index: 2, kind: input, shape index: {}]
  %s3 = inlined_call_operand.vmem [shape: f32[128,256], index: 3, kind: input, shape index: {}]
  %s4 = inlined_call_operand.vmem [shape: f32[16,256], index: 4, kind: input, shape index: {}]
  %s5 = inlined_call_operand.vmem [shape: f32[1,256], index: 5, kind: input, shape index: {}]
  %s6 = inlined_call_operand.vmem [shape: f32[128,128], index: 6, kind: input, shape index: {}]
  %s7 = inlined_call_operand.vmem [shape: f32[16,128], index: 7, kind: input, shape index: {}]
  %s8 = inlined_call_operand.vmem [shape: f32[1,128], index: 8, kind: input, shape index: {}]
  %s9 = inlined_call_operand.vmem [shape: f32[128,16], index: 9, kind: input, shape index: {}]
  %s10 = inlined_call_operand.vmem [shape: f32[1,16], index: 10, kind: input, shape index: {}]
  %s11 = inlined_call_operand.hbm [shape: f32[2,16], index: 11, kind: output, shape index: {}]
  %s12 = sld [smem:[#allocation0]]
  $region85: #{atgcn_forward.1} parent=0
    _
  %s14 = ssub.s32 1, %s12
  %s15 = scalar_select 0, %s14, %s12
  $region1: #{atgcn_forward.1} parent=0
    #allocation3 [shape = 'u8[1024]{0}', space=vmem, size = 0x400, scoped, tag = 'output window, operand 0, single buffered']
    #allocation4 [shape = 's32[2]{0}', space=sflag, size = 0x8, scoped, tag = 'scoped memory for atgcn_forward.1']
    %16 = vsyncpa [#allocation4], 0
    loop: start=0, step=1, limit=10
    $region2: #{atgcn_forward.1} parent=1 // loop_pre_header
      _
    $region3: #{atgcn_forward.1} parent=1 // loop_header
      %s18 = sphi 0, %s22
      %p19 = scmp.ge.s32.totalorder %s18, 10
      %s28 = sphi 0, %s30
      %s31 = sphi 0, %s28
      %s32 = sphi 0, %s31
      %s48 = sphi 0, %s32
      %s52 = sphi 0, %s52
      %s54 = sphi 0, %s52
      %s55 = sphi 0, %s54
      %s69 = sphi 0, %s55
      %s73 = sphi 0, %s73
      %s75 = sphi 0, %s73
      %s76 = sphi 0, %s75
      %s90 = sphi 0, %s76
      %s94 = sphi 0, %s94
      %s96 = sphi 0, %s94
      %s97 = sphi 0, %s96
      %s111 = sphi 0, %s97
      %s115 = sphi 0, %s115
      %s117 = sphi 0, %s115
      %s118 = sphi 0, %s117
      %s132 = sphi 0, %s118
      %s136 = sphi 0, %s136
      %s138 = sphi 0, %s136
      %s139 = sphi 0, %s138
      %s153 = sphi 0, %s139
      %s157 = sphi 0, %s157
      %s159 = sphi 0, %s157
      %s160 = sphi 0, %s159
      %s174 = sphi 0, %s160
      %s178 = sphi 0, %s178
      %s180 = sphi 0, %s178
      %s181 = sphi 0, %s180
      %s195 = sphi 0, %s181
      %s199 = sphi 0, %s199
      %s201 = sphi 0, %s199
      %s202 = sphi 0, %s201
      %s216 = sphi 0, %s202
      %s220 = sphi 0, %s220
      %s222 = sphi 0, %s220
      %s223 = sphi 0, %s222
      %s237 = sphi 0, %s223
      %s241 = sphi 0, %s241
      %s243 = sphi 0, %s241
      %s244 = sphi 0, %s243
      %s258 = sphi 0, %s244
      %s262 = sphi 0, %s262
      %s264 = sphi 0, %s262
      %s265 = sphi 0, %s264
      %s279 = sphi 0, %s265
    $region4: #{atgcn_forward.1} parent=1 // loop_header_branch
      %21 = sbr.rel (%p19) target = $region8
    $region5: #{atgcn_forward.1} parent=1 // loop_body
      %s23 = ssub.s32 %s18, 1
      %s24 = ssub.s32 %s18, 2
      %s25 = sadd.s32 %s18, 1
      %s26 = ssub.s32 %s18, %s25
      %p27 = scmp.eq.s32.totalorder %s26, 0
      %s29 = sadd.s32 %s28, 1
      %s30 = scalar_select %p27, %s28, %s29
      %p33 = pneg %p27
      %p34 = scmp.eq.s32.totalorder %s18, 7
      %p35 = por %p33, %p34
      %p36 = scmp.ne.s32.totalorder %s28, %s31
      %p37 = scmp.eq.s32.totalorder %s18, 0
      %p38 = por %p36, %p37
      %p39 = scmp.ne.s32.totalorder %s28, %s31
      %p40 = scmp.eq.s32.totalorder %s23, 7
      %p41 = por %p39, %p40
      %p42 = scmp.ne.s32.totalorder %s31, %s32
      %p43 = scmp.eq.s32.totalorder %s23, 0
      %p44 = por %p42, %p43
      %p45 = scmp.ne.s32.totalorder %s31, %s32
      %p46 = scmp.eq.s32.totalorder %s24, 7
      %p47 = por %p45, %p46
      %p49 = scmp.ne.s32.totalorder %s32, %s48
      %p50 = scmp.eq.s32.totalorder %s24, 0
      %p51 = por %p49, %p50
      %s53 = sadd.s32 %s52, 1
      %p56 = scmp.eq.s32.totalorder %s18, 7
      %p57 = scmp.ne.s32.totalorder %s52, %s54
      %p58 = scmp.eq.s32.totalorder %s18, 0
      %p59 = por %p57, %p58
      %p60 = scmp.ne.s32.totalorder %s52, %s54
      %p61 = scmp.eq.s32.totalorder %s23, 7
      %p62 = por %p60, %p61
      %p63 = scmp.ne.s32.totalorder %s54, %s55
      %p64 = scmp.eq.s32.totalorder %s23, 0
      %p65 = por %p63, %p64
      %p66 = scmp.ne.s32.totalorder %s54, %s55
      %p67 = scmp.eq.s32.totalorder %s24, 7
      %p68 = por %p66, %p67
      %p70 = scmp.ne.s32.totalorder %s55, %s69
      %p71 = scmp.eq.s32.totalorder %s24, 0
      %p72 = por %p70, %p71
      %s74 = sadd.s32 %s73, 1
      %p77 = scmp.eq.s32.totalorder %s18, 7
      %p78 = scmp.ne.s32.totalorder %s73, %s75
      %p79 = scmp.eq.s32.totalorder %s18, 0
      %p80 = por %p78, %p79
      %p81 = scmp.ne.s32.totalorder %s73, %s75
      %p82 = scmp.eq.s32.totalorder %s23, 7
      %p83 = por %p81, %p82
      %p84 = scmp.ne.s32.totalorder %s75, %s76
      %p85 = scmp.eq.s32.totalorder %s23, 0
      %p86 = por %p84, %p85
      %p87 = scmp.ne.s32.totalorder %s75, %s76
      %p88 = scmp.eq.s32.totalorder %s24, 7
      %p89 = por %p87, %p88
      %p91 = scmp.ne.s32.totalorder %s76, %s90
      %p92 = scmp.eq.s32.totalorder %s24, 0
      %p93 = por %p91, %p92
      %s95 = sadd.s32 %s94, 1
      %p98 = scmp.eq.s32.totalorder %s18, 7
      %p99 = scmp.ne.s32.totalorder %s94, %s96
      %p100 = scmp.eq.s32.totalorder %s18, 0
      %p101 = por %p99, %p100
      %p102 = scmp.ne.s32.totalorder %s94, %s96
      %p103 = scmp.eq.s32.totalorder %s23, 7
      %p104 = por %p102, %p103
      %p105 = scmp.ne.s32.totalorder %s96, %s97
      %p106 = scmp.eq.s32.totalorder %s23, 0
      %p107 = por %p105, %p106
      %p108 = scmp.ne.s32.totalorder %s96, %s97
      %p109 = scmp.eq.s32.totalorder %s24, 7
      %p110 = por %p108, %p109
      %p112 = scmp.ne.s32.totalorder %s97, %s111
      %p113 = scmp.eq.s32.totalorder %s24, 0
      %p114 = por %p112, %p113
      %s116 = sadd.s32 %s115, 1
      %p119 = scmp.eq.s32.totalorder %s18, 7
      %p120 = scmp.ne.s32.totalorder %s115, %s117
      %p121 = scmp.eq.s32.totalorder %s18, 0
      %p122 = por %p120, %p121
      %p123 = scmp.ne.s32.totalorder %s115, %s117
      %p124 = scmp.eq.s32.totalorder %s23, 7
      %p125 = por %p123, %p124
      %p126 = scmp.ne.s32.totalorder %s117, %s118
      %p127 = scmp.eq.s32.totalorder %s23, 0
      %p128 = por %p126, %p127
      %p129 = scmp.ne.s32.totalorder %s117, %s118
      %p130 = scmp.eq.s32.totalorder %s24, 7
      %p131 = por %p129, %p130
      %p133 = scmp.ne.s32.totalorder %s118, %s132
      %p134 = scmp.eq.s32.totalorder %s24, 0
      %p135 = por %p133, %p134
      %s137 = sadd.s32 %s136, 1
      %p140 = scmp.eq.s32.totalorder %s18, 7
      %p141 = scmp.ne.s32.totalorder %s136, %s138
      %p142 = scmp.eq.s32.totalorder %s18, 0
      %p143 = por %p141, %p142
      %p144 = scmp.ne.s32.totalorder %s136, %s138
      %p145 = scmp.eq.s32.totalorder %s23, 7
      %p146 = por %p144, %p145
      %p147 = scmp.ne.s32.totalorder %s138, %s139
      %p148 = scmp.eq.s32.totalorder %s23, 0
      %p149 = por %p147, %p148
      %p150 = scmp.ne.s32.totalorder %s138, %s139
      %p151 = scmp.eq.s32.totalorder %s24, 7
      %p152 = por %p150, %p151
      %p154 = scmp.ne.s32.totalorder %s139, %s153
      %p155 = scmp.eq.s32.totalorder %s24, 0
      %p156 = por %p154, %p155
      %s158 = sadd.s32 %s157, 1
      %p161 = scmp.eq.s32.totalorder %s18, 7
      %p162 = scmp.ne.s32.totalorder %s157, %s159
      %p163 = scmp.eq.s32.totalorder %s18, 0
      %p164 = por %p162, %p163
      %p165 = scmp.ne.s32.totalorder %s157, %s159
      %p166 = scmp.eq.s32.totalorder %s23, 7
      %p167 = por %p165, %p166
      %p168 = scmp.ne.s32.totalorder %s159, %s160
      %p169 = scmp.eq.s32.totalorder %s23, 0
      %p170 = por %p168, %p169
      %p171 = scmp.ne.s32.totalorder %s159, %s160
      %p172 = scmp.eq.s32.totalorder %s24, 7
      %p173 = por %p171, %p172
      %p175 = scmp.ne.s32.totalorder %s160, %s174
      %p176 = scmp.eq.s32.totalorder %s24, 0
      %p177 = por %p175, %p176
      %s179 = sadd.s32 %s178, 1
      %p182 = scmp.eq.s32.totalorder %s18, 7
      %p183 = scmp.ne.s32.totalorder %s178, %s180
      %p184 = scmp.eq.s32.totalorder %s18, 0
      %p185 = por %p183, %p184
      %p186 = scmp.ne.s32.totalorder %s178, %s180
      %p187 = scmp.eq.s32.totalorder %s23, 7
      %p188 = por %p186, %p187
      %p189 = scmp.ne.s32.totalorder %s180, %s181
      %p190 = scmp.eq.s32.totalorder %s23, 0
      %p191 = por %p189, %p190
      %p192 = scmp.ne.s32.totalorder %s180, %s181
      %p193 = scmp.eq.s32.totalorder %s24, 7
      %p194 = por %p192, %p193
      %p196 = scmp.ne.s32.totalorder %s181, %s195
      %p197 = scmp.eq.s32.totalorder %s24, 0
      %p198 = por %p196, %p197
      %s200 = sadd.s32 %s199, 1
      %p203 = scmp.eq.s32.totalorder %s18, 7
      %p204 = scmp.ne.s32.totalorder %s199, %s201
      %p205 = scmp.eq.s32.totalorder %s18, 0
      %p206 = por %p204, %p205
      %p207 = scmp.ne.s32.totalorder %s199, %s201
      %p208 = scmp.eq.s32.totalorder %s23, 7
      %p209 = por %p207, %p208
      %p210 = scmp.ne.s32.totalorder %s201, %s202
      %p211 = scmp.eq.s32.totalorder %s23, 0
      %p212 = por %p210, %p211
      %p213 = scmp.ne.s32.totalorder %s201, %s202
      %p214 = scmp.eq.s32.totalorder %s24, 7
      %p215 = por %p213, %p214
      %p217 = scmp.ne.s32.totalorder %s202, %s216
      %p218 = scmp.eq.s32.totalorder %s24, 0
      %p219 = por %p217, %p218
      %s221 = sadd.s32 %s220, 1
      %p224 = scmp.eq.s32.totalorder %s18, 7
      %p225 = scmp.ne.s32.totalorder %s220, %s222
      %p226 = scmp.eq.s32.totalorder %s18, 0
      %p227 = por %p225, %p226
      %p228 = scmp.ne.s32.totalorder %s220, %s222
      %p229 = scmp.eq.s32.totalorder %s23, 7
      %p230 = por %p228, %p229
      %p231 = scmp.ne.s32.totalorder %s222, %s223
      %p232 = scmp.eq.s32.totalorder %s23, 0
      %p233 = por %p231, %p232
      %p234 = scmp.ne.s32.totalorder %s222, %s223
      %p235 = scmp.eq.s32.totalorder %s24, 7
      %p236 = por %p234, %p235
      %p238 = scmp.ne.s32.totalorder %s223, %s237
      %p239 = scmp.eq.s32.totalorder %s24, 0
      %p240 = por %p238, %p239
      %s242 = sadd.s32 %s241, 1
      %p245 = scmp.eq.s32.totalorder %s18, 7
      %p246 = scmp.ne.s32.totalorder %s241, %s243
      %p247 = scmp.eq.s32.totalorder %s18, 0
      %p248 = por %p246, %p247
      %p249 = scmp.ne.s32.totalorder %s241, %s243
      %p250 = scmp.eq.s32.totalorder %s23, 7
      %p251 = por %p249, %p250
      %p252 = scmp.ne.s32.totalorder %s243, %s244
      %p253 = scmp.eq.s32.totalorder %s23, 0
      %p254 = por %p252, %p253
      %p255 = scmp.ne.s32.totalorder %s243, %s244
      %p256 = scmp.eq.s32.totalorder %s24, 7
      %p257 = por %p255, %p256
      %p259 = scmp.ne.s32.totalorder %s244, %s258
      %p260 = scmp.eq.s32.totalorder %s24, 0
      %p261 = por %p259, %p260
      %s263 = sadd.s32 %s262, 1
      %p266 = scmp.eq.s32.totalorder %s18, 7
      %p267 = scmp.ne.s32.totalorder %s262, %s264
      %p268 = scmp.eq.s32.totalorder %s18, 0
      %p269 = por %p267, %p268
      %p270 = scmp.ne.s32.totalorder %s262, %s264
      %p271 = scmp.eq.s32.totalorder %s23, 7
      %p272 = por %p270, %p271
      %p273 = scmp.ne.s32.totalorder %s264, %s265
      %p274 = scmp.eq.s32.totalorder %s23, 0
      %p275 = por %p273, %p274
      %p276 = scmp.ne.s32.totalorder %s264, %s265
      %p277 = scmp.eq.s32.totalorder %s24, 7
      %p278 = por %p276, %p277
      %p280 = scmp.ne.s32.totalorder %s265, %s279
      %p281 = scmp.eq.s32.totalorder %s24, 0
      %p282 = por %p280, %p281
      %p283 = scmp.le.s32.totalorder 1, %s18
      %p284 = scmp.lt.s32.totalorder %s18, 9
      %p285 = pnand %p283, %p284
      %p286 = pneg %p285
      // Predicated region
      $region9: #{atgcn_forward.1} parent=5 // pred_check
        _
      $region10: #{atgcn_forward.1} parent=5 // pred_check_branch
        %288 = sbr.rel (%p285) target = $region12
      $region11: #{atgcn_forward.1} parent=5 // pred_region
        %s289 = ssub.s32 %s18, 1
        // Predicated region
        $region13: #{atgcn_forward.1} parent=11 // pred_check
          %p290 = pneg %p65
        $region14: #{atgcn_forward.1} parent=11 // pred_check_branch
          %292 = sbr.rel (%p290) target = $region16
        $region15: #{atgcn_forward.1} parent=11 // pred_region
          _
        $region16: #{atgcn_forward.1} parent=11 // pred_fallthru
          _
        // Predicated region
        $region17: #{atgcn_forward.1} parent=11 // pred_check
          %p293 = pneg %p86
        $region18: #{atgcn_forward.1} parent=11 // pred_check_branch
          %295 = sbr.rel (%p293) target = $region20
        $region19: #{atgcn_forward.1} parent=11 // pred_region
          _
        $region20: #{atgcn_forward.1} parent=11 // pred_fallthru
          _
        // Predicated region
        $region21: #{atgcn_forward.1} parent=11 // pred_check
          %p296 = pneg %p107
        $region22: #{atgcn_forward.1} parent=11 // pred_check_branch
          %298 = sbr.rel (%p296) target = $region24
        $region23: #{atgcn_forward.1} parent=11 // pred_region
          _
        $region24: #{atgcn_forward.1} parent=11 // pred_fallthru
          _
        // Predicated region
        $region25: #{atgcn_forward.1} parent=11 // pred_check
          %p299 = pneg %p128
        $region26: #{atgcn_forward.1} parent=11 // pred_check_branch
          %301 = sbr.rel (%p299) target = $region28
        $region27: #{atgcn_forward.1} parent=11 // pred_region
          _
        $region28: #{atgcn_forward.1} parent=11 // pred_fallthru
          _
        // Predicated region
        $region29: #{atgcn_forward.1} parent=11 // pred_check
          %p302 = pneg %p149
        $region30: #{atgcn_forward.1} parent=11 // pred_check_branch
          %304 = sbr.rel (%p302) target = $region32
        $region31: #{atgcn_forward.1} parent=11 // pred_region
          _
        $region32: #{atgcn_forward.1} parent=11 // pred_fallthru
          _
        // Predicated region
        $region33: #{atgcn_forward.1} parent=11 // pred_check
          %p305 = pneg %p170
        $region34: #{atgcn_forward.1} parent=11 // pred_check_branch
          %307 = sbr.rel (%p305) target = $region36
        $region35: #{atgcn_forward.1} parent=11 // pred_region
          _
        $region36: #{atgcn_forward.1} parent=11 // pred_fallthru
          _
        // Predicated region
        $region37: #{atgcn_forward.1} parent=11 // pred_check
          %p308 = pneg %p191
        $region38: #{atgcn_forward.1} parent=11 // pred_check_branch
          %310 = sbr.rel (%p308) target = $region40
        $region39: #{atgcn_forward.1} parent=11 // pred_region
          _
        $region40: #{atgcn_forward.1} parent=11 // pred_fallthru
          _
        // Predicated region
        $region41: #{atgcn_forward.1} parent=11 // pred_check
          %p311 = pneg %p212
        $region42: #{atgcn_forward.1} parent=11 // pred_check_branch
          %313 = sbr.rel (%p311) target = $region44
        $region43: #{atgcn_forward.1} parent=11 // pred_region
          _
        $region44: #{atgcn_forward.1} parent=11 // pred_fallthru
          _
        // Predicated region
        $region45: #{atgcn_forward.1} parent=11 // pred_check
          %p314 = pneg %p233
        $region46: #{atgcn_forward.1} parent=11 // pred_check_branch
          %316 = sbr.rel (%p314) target = $region48
        $region47: #{atgcn_forward.1} parent=11 // pred_region
          _
        $region48: #{atgcn_forward.1} parent=11 // pred_fallthru
          _
        // Predicated region
        $region49: #{atgcn_forward.1} parent=11 // pred_check
          %p317 = pneg %p254
        $region50: #{atgcn_forward.1} parent=11 // pred_check_branch
          %319 = sbr.rel (%p317) target = $region52
        $region51: #{atgcn_forward.1} parent=11 // pred_region
          _
        $region52: #{atgcn_forward.1} parent=11 // pred_fallthru
          _
      $region12: #{atgcn_forward.1} parent=5 // pred_fallthru
        _
      %p320 = scmp.lt.s32.totalorder %s18, 8
      // Predicated region
      $region53: #{atgcn_forward.1} parent=5 // pred_check
        %p321 = pneg %p320
      $region54: #{atgcn_forward.1} parent=5 // pred_check_branch
        %323 = sbr.rel (%p321) target = $region56
      $region55: #{atgcn_forward.1} parent=5 // pred_region
        // Predicated region
        $region57: #{atgcn_forward.1} parent=55 // pred_check
          %p324 = pneg %p38
        $region58: #{atgcn_forward.1} parent=55 // pred_check_branch
          %326 = sbr.rel (%p324) target = $region60
        $region59: #{atgcn_forward.1} parent=55 // pred_region
          %p327 = scmp.lt.s32.totalorder %s18, 7
          %s328 = scalar_select %p327, %s18, 7
          %s329 = smul.addr %s328, 2
          %s330 = scalar_lea.vmem %s0, %s329
        $region60: #{atgcn_forward.1} parent=55 // pred_fallthru
          _
      $region56: #{atgcn_forward.1} parent=5 // pred_fallthru
        _
      %p331 = scmp.le.s32.totalorder 1, %s18
      %p332 = scmp.lt.s32.totalorder %s18, 9
      %p333 = pnand %p331, %p332
      %p334 = pneg %p333
      // Predicated region
      $region61: #{atgcn_forward.1} parent=5 // pred_check
        _
      $region62: #{atgcn_forward.1} parent=5 // pred_check_branch
        %336 = sbr.rel (%p333) target = $region64
      $region63: #{atgcn_forward.1} parent=5 // pred_region
        %s337 = ssub.s32 %s18, 1
        %p338 = scmp.lt.s32.totalorder %s23, 7
        %s339 = scalar_select %p338, %s23, 7
        %s340 = smul.addr %s339, 2
        %s341 = scalar_lea.vmem %s0, %s340
        %p342 = pneg %p44
        %p343 = pneg %p41
        %p344 = pneg %p65
        %p345 = pneg %p62
        %p346 = pneg %p86
        %p347 = pneg %p83
        %p348 = pneg %p107
        %p349 = pneg %p104
        %p350 = pneg %p128
        %p351 = pneg %p125
        %p352 = pneg %p149
        %p353 = pneg %p146
        %p354 = pneg %p170
        %p355 = pneg %p167
        %p356 = pneg %p191
        %p357 = pneg %p188
        %p358 = pneg %p212
        %p359 = pneg %p209
        %p360 = pneg %p233
        %p361 = pneg %p230
        %p362 = pneg %p254
        %p363 = pneg %p251
        %p364 = pneg %p275
        %p365 = pneg %p272
        %p366 = scmp.lt.s32.totalorder %s23, 7
        %s367 = scalar_select %p366, %s23, 7
        %s368 = smul.addr %s367, 2
        %s369 = scalar_lea.vmem %s0, %s368
        %p370 = scmp.eq.s32.totalorder %s23, 0
        // Predicated region
        $region65: #{atgcn_forward.1} parent=63 // pred_check
          %p371 = pneg %p370
        $region66: #{atgcn_forward.1} parent=63 // pred_check_branch
          %373 = sbr.rel (%p371) target = $region68
        $region67: #{atgcn_forward.1} parent=63 // pred_region
          %374 = vst [vmem:[#allocation2] sm:$0x3] 0.0
        $region68: #{atgcn_forward.1} parent=63 // pred_fallthru
          _
        %v375 = vld [vmem:[%s369] sm:$0x3]
        %v376 = vld [vmem:[%s1] sm:$0xff]
        %v377 = vld [vmem:[%s1 + $0x8] sm:$0xff]
        %vm378 = vcmask 130048
        %v380 = vsel %vm378, %v375, 0
        %382 = vmatpush.msra.mxu0 0.0
        %383 = vmatpush.msra.mxu0 0.0
        %384 = vmatpush.msra.mxu0 0.0
        %385 = vmatpush.msra.mxu0 0.0
        %386 = vmatpush.msra.mxu0 0.0
        %387 = vmatpush.msra.mxu0 0.0
        %388 = vmatpush.msra.mxu0 0.0
        %389 = vmatpush.msra.mxu0 0.0
        %390 = vmatpush.msra.mxu0 0.0
        %391 = vmatpush.msra.mxu0 0.0
        %392 = vmatpush.msra.mxu0 0.0
        %393 = vmatpush.msra.mxu0 0.0
        %394 = vmatpush.msra.mxu0 0.0
        %395 = vmatpush.msra.mxu0 0.0
        %396 = vmatpush.msra.mxu0 %v377
        %397 = vmatpush.msra.mxu0 %v376
        %398 = vmatmul.f32.gmra.mxu0 %v380
        %v399 = vpop.f32.mrf.mxu0
        %v400 = vadd.f32 0.0, %v399
        %401 = vdwg.mxu0
        %v402 = vld [vmem:[%s2] sm:$0x1]
        %v404 = vperm.slane %v402, 0
        %v406 = vmul.f32 %v375, %v404
        %s407 = smul.u32 %s23, 2
        %s408 = sadd.s32 %s407, 1
        %s409 = scvt.s32.f32 %s408
        %v410 = vstv %s409
        %v411 = vmul.f32 %v410, %v406
        %v412 = vadd.f32 %v400, %v411
        %s413 = sadd.f32 %s409, 1.0
        %v414 = vstv %s413
        %v415 = vmul.f32 %v414, %v406
        %v416 = vadd.f32 %v400, %v415
        %v417 = vld [vmem:[#allocation2] sm:$0x3]
        %v418 = vld [vmem:[%s3] sm:$0xff]
        %v419 = vld [vmem:[%s3 + $0x8] sm:$0xff]
        %v420 = vld [vmem:[%s3 + $0x10] sm:$0xff]
        %v421 = vld [vmem:[%s3 + $0x18] sm:$0xff]
        %v422 = vld [vmem:[%s3 + $0x20] sm:$0xff]
        %v423 = vld [vmem:[%s3 + $0x28] sm:$0xff]
        %v424 = vld [vmem:[%s3 + $0x30] sm:$0xff]
        %v425 = vld [vmem:[%s3 + $0x38] sm:$0xff]
        %v426 = vld [vmem:[%s3 + $0x40] sm:$0xff]
        %v427 = vld [vmem:[%s3 + $0x48] sm:$0xff]
        %v428 = vld [vmem:[%s3 + $0x50] sm:$0xff]
        %v429 = vld [vmem:[%s3 + $0x58] sm:$0xff]
        %v430 = vld [vmem:[%s3 + $0x60] sm:$0xff]
        %v431 = vld [vmem:[%s3 + $0x68] sm:$0xff]
        %v432 = vld [vmem:[%s3 + $0x70] sm:$0xff]
        %v433 = vld [vmem:[%s3 + $0x78] sm:$0xff]
        %v434 = vld [vmem:[%s3 + $0x80] sm:$0xff]
        %v435 = vld [vmem:[%s3 + $0x88] sm:$0xff]
        %v436 = vld [vmem:[%s3 + $0x90] sm:$0xff]
        %v437 = vld [vmem:[%s3 + $0x98] sm:$0xff]
        %v438 = vld [vmem:[%s3 + $0xa0] sm:$0xff]
        %v439 = vld [vmem:[%s3 + $0xa8] sm:$0xff]
        %v440 = vld [vmem:[%s3 + $0xb0] sm:$0xff]
        %v441 = vld [vmem:[%s3 + $0xb8] sm:$0xff]
        %v442 = vld [vmem:[%s3 + $0xc0] sm:$0xff]
        %v443 = vld [vmem:[%s3 + $0xc8] sm:$0xff]
        %v444 = vld [vmem:[%s3 + $0xd0] sm:$0xff]
        %v445 = vld [vmem:[%s3 + $0xd8] sm:$0xff]
        %v446 = vld [vmem:[%s3 + $0xe0] sm:$0xff]
        %v447 = vld [vmem:[%s3 + $0xe8] sm:$0xff]
        %v448 = vld [vmem:[%s3 + $0xf0] sm:$0xff]
        %v449 = vld [vmem:[%s3 + $0xf8] sm:$0xff]
        %v450 = vld [vmem:[%s4] sm:$0xff]
        %v451 = vld [vmem:[%s4 + $0x8] sm:$0xff]
        %v452 = vld [vmem:[%s4 + $0x10] sm:$0xff]
        %v453 = vld [vmem:[%s4 + $0x18] sm:$0xff]
        %v455 = vsel %vm378, %v412, 0
        %457 = vmatpush.msra.mxu0 0.0
        %458 = vmatpush.msra.mxu0 0.0
        %459 = vmatpush.msra.mxu0 0.0
        %460 = vmatpush.msra.mxu0 0.0
        %461 = vmatpush.msra.mxu0 0.0
        %462 = vmatpush.msra.mxu0 0.0
        %463 = vmatpush.msra.mxu0 0.0
        %464 = vmatpush.msra.mxu0 0.0
        %465 = vmatpush.msra.mxu0 0.0
        %466 = vmatpush.msra.mxu0 0.0
        %467 = vmatpush.msra.mxu0 0.0
        %468 = vmatpush.msra.mxu0 0.0
        %469 = vmatpush.msra.mxu0 0.0
        %470 = vmatpush.msra.mxu0 0.0
        %471 = vmatpush.msra.mxu0 %v452
        %472 = vmatpush.msra.mxu0 %v450
        %473 = vmatmul.f32.gmra.mxu0 %v455
        %v474 = vpop.f32.mrf.mxu0
        %v475 = vadd.f32 0.0, %v474
        %476 = vdwg.mxu0
        %477 = vmatpush.msra.mxu0 0.0
        %478 = vmatpush.msra.mxu0 0.0
        %479 = vmatpush.msra.mxu0 0.0
        %480 = vmatpush.msra.mxu0 0.0
        %481 = vmatpush.msra.mxu0 0.0
        %482 = vmatpush.msra.mxu0 0.0
        %483 = vmatpush.msra.mxu0 0.0
        %484 = vmatpush.msra.mxu0 0.0
        %485 = vmatpush.msra.mxu0 0.0
        %486 = vmatpush.msra.mxu0 0.0
        %487 = vmatpush.msra.mxu0 0.0
        %488 = vmatpush.msra.mxu0 0.0
        %489 = vmatpush.msra.mxu0 0.0
        %490 = vmatpush.msra.mxu0 0.0
        %491 = vmatpush.msra.mxu0 %v453
        %492 = vmatpush.msra.mxu0 %v451
        %493 = vmatmul.f32.gmra.mxu0 %v455
        %v494 = vpop.f32.mrf.mxu0
        %v495 = vadd.f32 0.0, %v494
        %496 = vdwg.mxu0
        %497 = vmatpush.msra.mxu0 %v448
        %498 = vmatpush.msra.mxu0 %v446
        %499 = vmatpush.msra.mxu0 %v444
        %500 = vmatpush.msra.mxu0 %v442
        %501 = vmatpush.msra.mxu0 %v440
        %502 = vmatpush.msra.mxu0 %v438
        %503 = vmatpush.msra.mxu0 %v436
        %504 = vmatpush.msra.mxu0 %v434
        %505 = vmatpush.msra.mxu0 %v432
        %506 = vmatpush.msra.mxu0 %v430
        %507 = vmatpush.msra.mxu0 %v428
        %508 = vmatpush.msra.mxu0 %v426
        %509 = vmatpush.msra.mxu0 %v424
        %510 = vmatpush.msra.mxu0 %v422
        %511 = vmatpush.msra.mxu0 %v420
        %512 = vmatpush.msra.mxu0 %v418
        %513 = vmatmul.f32.gmra.mxu0 %v417
        %v514 = vpop.f32.mrf.mxu0
        %v515 = vadd.f32 %v475, %v514
        %516 = vdwg.mxu0
        %517 = vmatpush.msra.mxu0 %v449
        %518 = vmatpush.msra.mxu0 %v447
        %519 = vmatpush.msra.mxu0 %v445
        %520 = vmatpush.msra.mxu0 %v443
        %521 = vmatpush.msra.mxu0 %v441
        %522 = vmatpush.msra.mxu0 %v439
        %523 = vmatpush.msra.mxu0 %v437
        %524 = vmatpush.msra.mxu0 %v435
        %525 = vmatpush.msra.mxu0 %v433
        %526 = vmatpush.msra.mxu0 %v431
        %527 = vmatpush.msra.mxu0 %v429
        %528 = vmatpush.msra.mxu0 %v427
        %529 = vmatpush.msra.mxu0 %v425
        %530 = vmatpush.msra.mxu0 %v423
        %531 = vmatpush.msra.mxu0 %v421
        %532 = vmatpush.msra.mxu0 %v419
        %533 = vmatmul.f32.gmra.mxu0 %v417
        %v534 = vpop.f32.mrf.mxu0
        %v535 = vadd.f32 %v495, %v534
        %536 = vdwg.mxu0
        %v537 = vld [vmem:[%s5] sm:$0x3]
        %v539 = vperm.slane %v537, 0
        %v540 = vperm.slane %v537, 1
        %v543 = vadd.f32 %v515, %v539
        %v544 = vadd.f32 %v535, %v540
        %v545 = vxor.u32 %v543, 2147483648
        %v546 = vxor.u32 %v544, 2147483648
        %v547 = vmul.f32 %v545, 1.442695
        %v548 = vpow.pop %v547
        %v549 = vmul.f32 %v546, 1.442695
        %v550 = vpow.pop %v549
        %v551 = vadd.f32 %v548, 1.0
        %v552 = vadd.f32 %v550, 1.0
        %v553 = vrcp.pop %v551
        %v554 = vmul.f32 %v551, %v553
        %v555 = vsub.f32 1.0, %v554
        %v556 = vmul.f32 %v553, %v555
        %v557 = vadd.f32 %v553, %v556
        %vm558 = vweird.f32 %v551
        %vm559 = vweird.f32 %v553
        %vm560 = vmor %vm558, %vm559
        %v561 = vsel %vm560, %v553, %v557
        %v562 = vand.u32 2147483647, %v551
        %vm563 = vcmp.eq.f32.partialorder %v562, 8.507059e+37
        %v564 = vand.u32 %v551, 2147483648
        %v565 = vor.u32 1.1754944e-38, %v564
        %v566 = vsel %vm563, %v565, %v561
        %v567 = vmul.f32 1.0, %v566
        %v568 = vrcp.pop %v552
        %v569 = vmul.f32 %v552, %v568
        %v570 = vsub.f32 1.0, %v569
        %v571 = vmul.f32 %v568, %v570
        %v572 = vadd.f32 %v568, %v571
        %vm573 = vweird.f32 %v552
        %vm574 = vweird.f32 %v568
        %vm575 = vmor %vm573, %vm574
        %v576 = vsel %vm575, %v568, %v572
        %v577 = vand.u32 2147483647, %v552
        %vm578 = vcmp.eq.f32.partialorder %v577, 8.507059e+37
        %v579 = vand.u32 %v552, 2147483648
        %v580 = vor.u32 1.1754944e-38, %v579
        %v581 = vsel %vm578, %v580, %v576
        %v582 = vmul.f32 1.0, %v581
        %v583 = vmul.f32 %v567, %v417
        %v584 = vld [vmem:[%s6] sm:$0xff]
        %v585 = vld [vmem:[%s6 + $0x8] sm:$0xff]
        %v586 = vld [vmem:[%s6 + $0x10] sm:$0xff]
        %v587 = vld [vmem:[%s6 + $0x18] sm:$0xff]
        %v588 = vld [vmem:[%s6 + $0x20] sm:$0xff]
        %v589 = vld [vmem:[%s6 + $0x28] sm:$0xff]
        %v590 = vld [vmem:[%s6 + $0x30] sm:$0xff]
        %v591 = vld [vmem:[%s6 + $0x38] sm:$0xff]
        %v592 = vld [vmem:[%s6 + $0x40] sm:$0xff]
        %v593 = vld [vmem:[%s6 + $0x48] sm:$0xff]
        %v594 = vld [vmem:[%s6 + $0x50] sm:$0xff]
        %v595 = vld [vmem:[%s6 + $0x58] sm:$0xff]
        %v596 = vld [vmem:[%s6 + $0x60] sm:$0xff]
        %v597 = vld [vmem:[%s6 + $0x68] sm:$0xff]
        %v598 = vld [vmem:[%s6 + $0x70] sm:$0xff]
        %v599 = vld [vmem:[%s6 + $0x78] sm:$0xff]
        %v600 = vld [vmem:[%s7] sm:$0xff]
        %v601 = vld [vmem:[%s7 + $0x8] sm:$0xff]
        %v603 = vsel %vm378, %v416, 0
        %605 = vmatpush.msra.mxu0 0.0
        %606 = vmatpush.msra.mxu0 0.0
        %607 = vmatpush.msra.mxu0 0.0
        %608 = vmatpush.msra.mxu0 0.0
        %609 = vmatpush.msra.mxu0 0.0
        %610 = vmatpush.msra.mxu0 0.0
        %611 = vmatpush.msra.mxu0 0.0
        %612 = vmatpush.msra.mxu0 0.0
        %613 = vmatpush.msra.mxu0 0.0
        %614 = vmatpush.msra.mxu0 0.0
        %615 = vmatpush.msra.mxu0 0.0
        %616 = vmatpush.msra.mxu0 0.0
        %617 = vmatpush.msra.mxu0 0.0
        %618 = vmatpush.msra.mxu0 0.0
        %619 = vmatpush.msra.mxu0 %v601
        %620 = vmatpush.msra.mxu0 %v600
        %621 = vmatmul.f32.gmra.mxu0 %v603
        %v622 = vpop.f32.mrf.mxu0
        %v623 = vadd.f32 0.0, %v622
        %624 = vdwg.mxu0
        %625 = vmatpush.msra.mxu0 %v599
        %626 = vmatpush.msra.mxu0 %v598
        %627 = vmatpush.msra.mxu0 %v597
        %628 = vmatpush.msra.mxu0 %v596
        %629 = vmatpush.msra.mxu0 %v595
        %630 = vmatpush.msra.mxu0 %v594
        %631 = vmatpush.msra.mxu0 %v593
        %632 = vmatpush.msra.mxu0 %v592
        %633 = vmatpush.msra.mxu0 %v591
        %634 = vmatpush.msra.mxu0 %v590
        %635 = vmatpush.msra.mxu0 %v589
        %636 = vmatpush.msra.mxu0 %v588
        %637 = vmatpush.msra.mxu0 %v587
        %638 = vmatpush.msra.mxu0 %v586
        %639 = vmatpush.msra.mxu0 %v585
        %640 = vmatpush.msra.mxu0 %v584
        %641 = vmatmul.f32.gmra.mxu0 %v583
        %v642 = vpop.f32.mrf.mxu0
        %v643 = vadd.f32 %v623, %v642
        %644 = vdwg.mxu0
        %v645 = vld [vmem:[%s8] sm:$0x1]
        %v647 = vperm.slane %v645, 0
        %v649 = vadd.f32 %v643, %v647
        %v650 = vtanh.pop %v649
        %v651 = vmul.f32 %v582, %v417
        %v652 = vsub.f32 1.0, %v582
        %v653 = vmul.f32 %v652, %v650
        %v654 = vadd.f32 %v651, %v653
        %655 = vst [vmem:[#allocation2] sm:$0x3] %v654
        %p656 = scmp.eq.s32.totalorder %s23, 7
        // Predicated region
        $region69: #{atgcn_forward.1} parent=63 // pred_check
          %p657 = pneg %p656
        $region70: #{atgcn_forward.1} parent=63 // pred_check_branch
          %659 = sbr.rel (%p657) target = $region72
        $region71: #{atgcn_forward.1} parent=63 // pred_region
          %v660 = vld [vmem:[%s9] sm:$0xff]
          %v661 = vld [vmem:[%s9 + $0x8] sm:$0xff]
          %v662 = vld [vmem:[%s9 + $0x10] sm:$0xff]
          %v663 = vld [vmem:[%s9 + $0x18] sm:$0xff]
          %v664 = vld [vmem:[%s9 + $0x20] sm:$0xff]
          %v665 = vld [vmem:[%s9 + $0x28] sm:$0xff]
          %v666 = vld [vmem:[%s9 + $0x30] sm:$0xff]
          %v667 = vld [vmem:[%s9 + $0x38] sm:$0xff]
          %v668 = vld [vmem:[%s9 + $0x40] sm:$0xff]
          %v669 = vld [vmem:[%s9 + $0x48] sm:$0xff]
          %v670 = vld [vmem:[%s9 + $0x50] sm:$0xff]
          %v671 = vld [vmem:[%s9 + $0x58] sm:$0xff]
          %v672 = vld [vmem:[%s9 + $0x60] sm:$0xff]
          %v673 = vld [vmem:[%s9 + $0x68] sm:$0xff]
          %v674 = vld [vmem:[%s9 + $0x70] sm:$0xff]
          %v675 = vld [vmem:[%s9 + $0x78] sm:$0xff]
          %v676 = vld [vmem:[%s10] sm:$0x1]
          %v678 = vperm.slane %v676, 0
          %680 = vmatpush.msra.mxu0 %v675
          %681 = vmatpush.msra.mxu0 %v674
          %682 = vmatpush.msra.mxu0 %v673
          %683 = vmatpush.msra.mxu0 %v672
          %684 = vmatpush.msra.mxu0 %v671
          %685 = vmatpush.msra.mxu0 %v670
          %686 = vmatpush.msra.mxu0 %v669
          %687 = vmatpush.msra.mxu0 %v668
          %688 = vmatpush.msra.mxu0 %v667
          %689 = vmatpush.msra.mxu0 %v666
          %690 = vmatpush.msra.mxu0 %v665
          %691 = vmatpush.msra.mxu0 %v664
          %692 = vmatpush.msra.mxu0 %v663
          %693 = vmatpush.msra.mxu0 %v662
          %694 = vmatpush.msra.mxu0 %v661
          %695 = vmatpush.msra.mxu0 %v660
          %696 = vmatmul.f32.gmra.mxu0 %v654
          %v697 = vpop.f32.mrf.mxu0
          %v698 = vadd.f32 %v678, %v697
          %699 = vdwg.mxu0
          %vm700 = vcmask 123904
          %701 = vst.msk [vmem:[#allocation3] sm:$0x3] %vm700, %v698
        $region72: #{atgcn_forward.1} parent=63 // pred_fallthru
          _
        // Predicated region
        $region73: #{atgcn_forward.1} parent=63 // pred_check
          %p702 = pneg %p272
        $region74: #{atgcn_forward.1} parent=63 // pred_check_branch
          %704 = sbr.rel (%p702) target = $region76
        $region75: #{atgcn_forward.1} parent=63 // pred_region
          %706 = vsyncadd [#allocation4], 0
          %s708 = sshll.u32 [#allocation3], 4
          %s709 = int_to_ptr.vmem [resolvable:$true] %s708
          %s710 = sshll.u32 %s11, 4
          %s711 = int_to_ptr.hbm [resolvable:$true] %s710
          %713 = dma.vmem_to_hbm [thread:$0]  %s709, 32, %s711, [#allocation4]
        $region76: #{atgcn_forward.1} parent=63 // pred_fallthru
          _
        // Predicated region
        $region77: #{atgcn_forward.1} parent=63 // pred_check
          %p714 = pneg %p272
        $region78: #{atgcn_forward.1} parent=63 // pred_check_branch
          %716 = sbr.rel (%p714) target = $region80
        $region79: #{atgcn_forward.1} parent=63 // pred_region
          %718 = dma.done [#allocation4], 32
        $region80: #{atgcn_forward.1} parent=63 // pred_fallthru
          _
      $region64: #{atgcn_forward.1} parent=5 // pred_fallthru
        _
      %p719 = scmp.le.s32.totalorder 2, %s18
      // Predicated region
      $region81: #{atgcn_forward.1} parent=5 // pred_check
        %p720 = pneg %p719
      $region82: #{atgcn_forward.1} parent=5 // pred_check_branch
        %722 = sbr.rel (%p720) target = $region84
      $region83: #{atgcn_forward.1} parent=5 // pred_region
        %s723 = ssub.s32 %s18, 2
      $region84: #{atgcn_forward.1} parent=5 // pred_fallthru
        _
    $region6: #{atgcn_forward.1} parent=1 // loop_footer
      %s22 = sadd.s32 1, %s18
    $region7: #{atgcn_forward.1} parent=1 // loop_footer_branch
      %17 = sbr.rel target = $region3
    $region8: #{atgcn_forward.1} parent=1 // loop_exit
      _
    %724 = vsyncpa [#allocation4], 1
    %s725 = scalar_lea.sflag [#allocation4], 1
    %726 = vsyncpa %s725, 1

</llo_original>
